<compile_context>
chip_gen: v7x
topology: tpu7x:2x2x1
jax: 0.10.0
libtpu: 0.0.40
codegen_flags: <defaults>
</compile_context>

<pallas_src>
import functools
import math
from typing import Optional

import jax
import jax.numpy as jnp
from jax.experimental import pallas as pl
from jax.experimental.pallas import tpu as pltpu


def _pow_int(x, n: int):
    """x ** n for integer n >= 1 via exponentiation-by-squaring (VPU muls only)."""
    result = None
    base = x
    while n > 0:
        if n & 1:
            result = base if result is None else result * base
        n >>= 1
        if n:
            base = base * base
    return result


def _is_static_int_p(static_p) -> bool:
    return (static_p is not None
            and float(static_p) == int(static_p)
            and int(static_p) >= 1)


def _gem_kernel(p_ref, x_ref, o_ref, acc_ref, *, eps: float, hw: int,
                static_p: Optional[float]):
    """One grid step.

    p_ref  : SMEM (1,) f32            learnable GeM exponent
    x_ref  : VMEM (tb, tc, thw)       input chunk (HW on the 128-lane axis)
    o_ref  : VMEM (tb, tc, 1)         pooled output (written on last hw step)
    acc_ref: VMEM (tb, tc, thw) f32   running elementwise sum of x**p
    """
    h = pl.program_id(2)

    x = x_ref[...].astype(jnp.float32)
    x = jnp.maximum(x, eps)                     # clamp(min=eps) -> x >= eps > 0

    if _is_static_int_p(static_p):
        # Integer-p fast path: pure VPU multiply chain (no per-element EUP).
        xp = _pow_int(x, int(static_p))
        inv_p = 1.0 / float(static_p)
    else:
        p = p_ref[0]
        # x ** p via exp/log (EUP path); valid because x >= eps > 0.
        xp = jnp.exp(p * jnp.log(x))
        inv_p = 1.0 / p

    @pl.when(h == 0)
    def _first():
        acc_ref[...] = xp                       # no separate zero-init pass

    @pl.when(h > 0)
    def _rest():
        acc_ref[...] += xp                      # full-vreg VPU adds per step

    @pl.when(h == pl.num_programs(2) - 1)
    def _finalize():
        # One cross-lane (XLU) reduce per output tile, then mean ** (1/p):
        #   mean ** (1/p) == exp((log(sum) - log(hw)) * (1/p))
        s = jnp.sum(acc_ref[...], axis=-1, keepdims=True)
        y = jnp.exp((jnp.log(s) - math.log(hw)) * inv_p)
        o_ref[...] = y.astype(o_ref.dtype)


def _largest_divisor(n: int, multiple: int, cap: int):
    """Largest d <= cap with d % multiple == 0 and n % d == 0, else None."""
    best = None
    d = multiple
    top = min(n, cap)
    while d <= top:
        if n % d == 0:
            best = d
        d += multiple
    return best


def gem_pool2d(x, p, eps: float = 1e-4, *,
               static_p: Optional[float] = None,
               target_block_bytes: int = 4 * 1024 * 1024,
               vmem_limit_bytes: int = 32 * 1024 * 1024):
    """GeM pooling.  x: (B, C, H, W), p: (1,) float32.  Returns (B, C, 1, 1).

    If static_p is a positive integer it must equal the runtime p; the kernel
    then uses a VPU multiply chain instead of per-element exp/log.
    """
    assert eps > 0.0, "eps must be > 0 (log/exp power requires x > 0)"
    B, C, H, W = x.shape
    HW = H * W
    itemsize = x.dtype.itemsize

    # Free layout: collapse spatial dims -> (B, C, HW).  HW lands on the
    # 128-lane axis, C on sublanes; no HBM transpose pass.
    x3 = x.reshape(B, C, HW)

    # ---- tile selection (one input block ~<= target_block_bytes) ----------
    # lane / reduction axis: spatial.  Multiple of 128 dividing HW, else full.
    budget_hw = max(128, target_block_bytes // (8 * itemsize))
    tile_hw = _largest_divisor(HW, 128, budget_hw) or HW
    # sublane axis: channels.  Multiple of 8 dividing C, else full C.
    budget_c = max(8, target_block_bytes // (tile_hw * itemsize))
    tile_c = _largest_divisor(C, 8, budget_c) or C
    # batch axis: grow the block toward the byte target.
    budget_b = max(1, target_block_bytes // (tile_c * tile_hw * itemsize))
    tile_b = _largest_divisor(B, 1, budget_b) or 1

    # v7x megacore: keep >= 2 blocks on the "parallel" (batch, channel) axes
    # so the grid can shard across both TensorCores; no effect on v5e/v6e.
    if (B // tile_b) * (C // tile_c) < 2:
        if B >= 2:
            tile_b = _largest_divisor(B, 1, B // 2) or 1
        elif C // tile_c < 2:
            smaller_c = _largest_divisor(C, 8, C // 2)
            if smaller_c is not None:
                tile_c = smaller_c

    grid = (B // tile_b, C // tile_c, HW // tile_hw)

    n_elems = B * C * HW
    if _is_static_int_p(static_p):
        n = int(static_p)
        muls = max(n.bit_length() + bin(n).count("1") - 2, 0)
        flops = (2 + muls) * n_elems
        transcendentals = 2 * B * C
    else:
        flops = 3 * n_elems
        transcendentals = 2 * n_elems + 2 * B * C
    cost = pl.CostEstimate(
        flops=flops,
        transcendentals=transcendentals,
        bytes_accessed=n_elems * itemsize + B * C * itemsize,
    )

    out = pl.pallas_call(
        functools.partial(_gem_kernel, eps=float(eps), hw=HW, static_p=static_p),
        out_shape=jax.ShapeDtypeStruct((B, C, 1), x.dtype),
        grid=grid,
        in_specs=[
            pl.BlockSpec(memory_space=pltpu.MemorySpace.SMEM),           # p
            pl.BlockSpec((tile_b, tile_c, tile_hw),
                         lambda b, c, h: (b, c, h)),                     # x
        ],
        out_specs=pl.BlockSpec((tile_b, tile_c, 1),
                               lambda b, c, h: (b, c, 0)),
        scratch_shapes=[pltpu.VMEM((tile_b, tile_c, tile_hw), jnp.float32)],
        compiler_params=pltpu.CompilerParams(
            dimension_semantics=("parallel", "parallel", "arbitrary"),
            vmem_limit_bytes=vmem_limit_bytes,
        ),
        cost_estimate=cost,
    )(p, x3)

    return out.reshape(B, C, 1, 1)


def gem_pool2d_ref(x, p, eps=1e-4):
    """Pure-JAX reference mirroring the PyTorch forward."""
    xp = jnp.maximum(x, eps) ** p[0]
    return jnp.mean(xp, axis=(2, 3), keepdims=True) ** (1.0 / p[0])


if __name__ == "__main__":
    eps = 1e-4
    # Deterministic parameter init matching nn.Parameter(torch.ones(1) * 3).
    p = jnp.ones((1,), dtype=jnp.float32) * 3.0

    # Small shape implied by the module spec (b c f t).
    B, C, H, W = 2, 4, 16, 16
    x = jax.random.uniform(jax.random.PRNGKey(0), (B, C, H, W),
                           dtype=jnp.float32, minval=-1.0, maxval=2.0)
    y = jax.block_until_ready(gem_pool2d(x, p, eps=eps))
    y_ref = gem_pool2d_ref(x, p, eps=eps)
    assert y.shape == (B, C, 1, 1), y.shape
    assert jnp.allclose(y, y_ref, rtol=1e-4, atol=1e-4), (
        float(jnp.max(jnp.abs(y - y_ref))))

    # Larger shape with a small block target: exercises the multi-step spatial
    # reduction (accumulator first/accumulate/finalize) and the parallel
    # batch/channel grid axes.
    B2, C2, H2, W2 = 2, 128, 32, 32
    x2 = jax.random.uniform(jax.random.PRNGKey(1), (B2, C2, H2, W2),
                            dtype=jnp.float32, minval=-1.0, maxval=2.0)
    y2 = jax.block_until_ready(
        gem_pool2d(x2, p, eps=eps, target_block_bytes=16 * 1024))
    y2_ref = gem_pool2d_ref(x2, p, eps=eps)
    assert y2.shape == (B2, C2, 1, 1), y2.shape
    assert jnp.allclose(y2, y2_ref, rtol=1e-4, atol=1e-4), (
        float(jnp.max(jnp.abs(y2 - y2_ref))))

    # Static integer-p fast path (VPU multiply chain, no per-element EUP).
    y3 = jax.block_until_ready(
        gem_pool2d(x2, p, eps=eps, static_p=3.0, target_block_bytes=16 * 1024))
    assert jnp.allclose(y3, y2_ref, rtol=1e-4, atol=1e-4), (
        float(jnp.max(jnp.abs(y3 - y2_ref))))

    print("KERNEL_OK")
</pallas_src>

<mosaic_0001>
module attributes {stable_mosaic.version = 11 : i64} {
  func.func @_gem_kernel(%arg0: i32, %arg1: i32, %arg2: i32, %arg3: memref<1xf32, #tpu.memory_space<smem>>, %arg4: memref<1x4x256xf32, #tpu.memory_space<vmem>>, %arg5: memref<1x4x1xf32, #tpu.memory_space<vmem>>, %arg6: memref<1x4x256xf32, #tpu.memory_space<vmem>>) attributes {dimension_semantics = [#tpu.dimension_semantics<parallel>, #tpu.dimension_semantics<parallel>, #tpu.dimension_semantics<arbitrary>], iteration_bounds = array<i64: 2, 1, 1>, scalar_prefetch = 0 : i64, scratch_operands = 1 : i64, tpu.core_type = #tpu.core_type<tc>, window_params = [{transform_indices = @transform_0, window_bounds = array<i64: 1>}, {transform_indices = @transform_1, window_bounds = array<i64: 1, 4, 256>}, {transform_indices = @transform_2, window_bounds = array<i64: 1, 4, 1>}]} {
    %c0 = arith.constant 0 : index
    %c0_0 = arith.constant 0 : index
    %c0_1 = arith.constant 0 : index
    %0 = vector.load %arg4[%c0, %c0_0, %c0_1] : memref<1x4x256xf32, #tpu.memory_space<vmem>>, vector<1x4x256xf32>
    %cst = arith.constant 9.99999974E-5 : f32
    %1 = vector.broadcast %cst : f32 to vector<1x4x256xf32>
    %2 = arith.maximumf %0, %1 : vector<1x4x256xf32>
    %c0_2 = arith.constant 0 : index
    %3 = memref.load %arg3[%c0_2] : memref<1xf32, #tpu.memory_space<smem>>
    %4 = math.log %2 : vector<1x4x256xf32>
    %5 = vector.broadcast %3 : f32 to vector<1x4x256xf32>
    %6 = arith.mulf %5, %4 : vector<1x4x256xf32>
    %7 = math.exp %6 : vector<1x4x256xf32>
    %cst_3 = arith.constant 1.000000e+00 : f32
    %8 = arith.divf %cst_3, %3 : f32
    %c0_i32 = arith.constant 0 : i32
    %9 = arith.cmpi eq, %arg2, %c0_i32 : i32
    %10 = arith.extui %9 : i1 to i32
    %c0_i32_4 = arith.constant 0 : i32
    %11 = arith.cmpi ne, %10, %c0_i32_4 : i32
    scf.if %11 {
      %c0_9 = arith.constant 0 : index
      %c0_10 = arith.constant 0 : index
      %c0_11 = arith.constant 0 : index
      %18 = vector.load %arg6[%c0_9, %c0_10, %c0_11] : memref<1x4x256xf32, #tpu.memory_space<vmem>>, vector<1x4x256xf32>
      tpu.vector_store %arg6[%c0_9, %c0_10, %c0_11], %7 {strides = array<i32>} : memref<1x4x256xf32, #tpu.memory_space<vmem>>, vector<1x4x256xf32>,
    } else {
    }
    %c0_i32_5 = arith.constant 0 : i32
    %12 = arith.cmpi sgt, %arg2, %c0_i32_5 : i32
    %13 = arith.extui %12 : i1 to i32
    %c0_i32_6 = arith.constant 0 : i32
    %14 = arith.cmpi ne, %13, %c0_i32_6 : i32
    scf.if %14 {
      %c0_9 = arith.constant 0 : index
      %c0_10 = arith.constant 0 : index
      %c0_11 = arith.constant 0 : index
      %18 = vector.load %arg6[%c0_9, %c0_10, %c0_11] : memref<1x4x256xf32, #tpu.memory_space<vmem>>, vector<1x4x256xf32>
      %19 = arith.addf %18, %7 : vector<1x4x256xf32>
      %c0_12 = arith.constant 0 : index
      %c0_13 = arith.constant 0 : index
      %c0_14 = arith.constant 0 : index
      %20 = vector.load %arg6[%c0_12, %c0_13, %c0_14] : memref<1x4x256xf32, #tpu.memory_space<vmem>>, vector<1x4x256xf32>
      tpu.vector_store %arg6[%c0_12, %c0_13, %c0_14], %19 {strides = array<i32>} : memref<1x4x256xf32, #tpu.memory_space<vmem>>, vector<1x4x256xf32>,
    } else {
    }
    %c0_i32_7 = arith.constant 0 : i32
    %15 = arith.cmpi eq, %arg2, %c0_i32_7 : i32
    %16 = arith.extui %15 : i1 to i32
    %c0_i32_8 = arith.constant 0 : i32
    %17 = arith.cmpi ne, %16, %c0_i32_8 : i32
    scf.if %17 {
      %c0_9 = arith.constant 0 : index
      %c0_10 = arith.constant 0 : index
      %c0_11 = arith.constant 0 : index
      %18 = vector.load %arg6[%c0_9, %c0_10, %c0_11] : memref<1x4x256xf32, #tpu.memory_space<vmem>>, vector<1x4x256xf32>
      %cst_12 = arith.constant dense<0.000000e+00> : vector<1x4xf32>
      %19 = vector.multi_reduction <add>, %18, %cst_12 [2] : vector<1x4x256xf32> to vector<1x4xf32>
      %20 = vector.shape_cast %19 : vector<1x4xf32> to vector<1x4x1xf32>
      %21 = math.log %20 : vector<1x4x1xf32>
      %cst_13 = arith.constant 5.54517746 : f32
      %22 = vector.broadcast %cst_13 : f32 to vector<1x4x1xf32>
      %23 = arith.subf %21, %22 : vector<1x4x1xf32>
      %24 = vector.broadcast %8 : f32 to vector<1x4x1xf32>
      %25 = arith.mulf %23, %24 : vector<1x4x1xf32>
      %26 = math.exp %25 : vector<1x4x1xf32>
      %c0_14 = arith.constant 0 : index
      %c0_15 = arith.constant 0 : index
      %c0_16 = arith.constant 0 : index
      %27 = vector.load %arg5[%c0_14, %c0_15, %c0_16] : memref<1x4x1xf32, #tpu.memory_space<vmem>>, vector<1x4x1xf32>
      tpu.vector_store %arg5[%c0_14, %c0_15, %c0_16], %26 {strides = array<i32>} : memref<1x4x1xf32, #tpu.memory_space<vmem>>, vector<1x4x1xf32>,
    } else {
    }
    return
  }
  func.func @transform_0(%arg0: i32, %arg1: i32, %arg2: i32) -> i32 {
    %c0_i32 = arith.constant 0 : i32
    %c0_i32_0 = arith.constant 0 : i32
    return %c0_i32 : i32
  }
  func.func @transform_1(%arg0: i32, %arg1: i32, %arg2: i32) -> (i32, i32, i32) {
    %c0_i32 = arith.constant 0 : i32
    return %arg0, %arg1, %arg2 : i32, i32, i32
  }
  func.func @transform_2(%arg0: i32, %arg1: i32, %arg2: i32) -> (i32, i32, i32) {
    %c0_i32 = arith.constant 0 : i32
    %c0_i32_0 = arith.constant 0 : i32
    return %arg0, %arg1, %c0_i32 : i32, i32, i32
  }
}

</mosaic_0001>

<llo_original>
// kernel: tpu_custom_call.1
$region0: #{tpu_custom_call.1}
  #allocation0 [shape = 'u32[]', space=smem, size = 0x4, offset = 0x4, fixed_abs, tag = 'smem constant byte address 0x4 - core index']
  #allocation1 [shape = 'u32[144,128]{1,0:T(1,128)}', space=vmem, size = 0x12000, scoped, tag = 'internal scratch']
  #allocation2 [shape = 'f32[1,4,256]{2,1,0:T(4,128)}', space=vmem, size = 0x1000, scoped, tag = 'scratch operand']
  #allocation3 [shape = 'f32[1]{0:T(128)S(6)}', space=smem, size = 0x200, scoped, tag = 'scoped memory for tpu_custom_call.1']
  %s0 = inlined_call_operand.<no memory space> [shape: f32[1], index: 0, kind: input, shape index: {}]
  %s1 = inlined_call_operand.hbm [shape: f32[2,4,256], index: 1, kind: input, shape index: {}]
  %s2 = inlined_call_operand.vmem [shape: f32[2,4,1], index: 2, kind: output, shape index: {}]
  %s3 = sld [smem:[#allocation0]]
  $region57: #{tpu_custom_call.1} parent=0
    _
  %s5 = ssub.s32 1, %s3
  %s6 = scalar_select 0, %s5, %s3
  %7 = sst [smem:[#allocation3]] %s0
  $region1: #{tpu_custom_call.1} parent=0
    #allocation4 [shape = 'u8[8192]{0}', space=vmem, size = 0x2000, scoped, tag = 'input window, operand 1']
    #allocation5 [shape = 's32[2]{0}', space=sflag, size = 0x8, scoped, tag = 'scoped memory for tpu_custom_call.1']
    %8 = vsyncpa [#allocation5], 0
    %s9 = scalar_lea.sflag [#allocation5], 1
    %10 = vsyncpa %s9, 0
    loop: start=0, step=1, limit=4
    $region2: #{tpu_custom_call.1} parent=1 // loop_pre_header
      _
    $region3: #{tpu_custom_call.1} parent=1 // loop_header
      %s12 = sphi 0, %s16
      %p13 = scmp.ge.s32.totalorder %s12, 4
      %s19 = sphi 0, %s38
      %s20 = sphi 0, %s34
      %s21 = sphi 0, %s30
      %s22 = sphi 0, %s19
      %s23 = sphi 0, %s20
      %s24 = sphi 0, %s21
      %s25 = sphi 0, %s22
      %s26 = sphi 0, %s23
      %s27 = sphi 0, %s24
      %s39 = sphi 0, %s39
      %s41 = sphi 0, %s39
      %s42 = sphi 0, %s41
      %s56 = sphi 0, %s42
      %s66 = sphi 0, %s68
      %s69 = sphi 0, %s66
      %s70 = sphi 0, %s69
      %s86 = sphi 0, %s70
      %s94 = sphi 0, %s96
      %s97 = sphi 0, %s94
      %s98 = sphi 0, %s97
      %s114 = sphi 0, %s98
    $region4: #{tpu_custom_call.1} parent=1 // loop_header_branch
      %15 = sbr.rel (%p13) target = $region8
    $region5: #{tpu_custom_call.1} parent=1 // loop_body
      %s17 = ssub.s32 %s12, 1
      %s18 = ssub.s32 %s12, 2
      %s28 = sadd.s32 1, %s21
      %p29 = scmp.ge.s32.totalorder %s28, 1
      %s30 = scalar_select %p29, 0, %s28
      %s31 = sadd.s32 1, %s20
      %s32 = scalar_select %p29, %s31, %s20
      %p33 = scmp.ge.s32.totalorder %s32, 1
      %s34 = scalar_select %p33, 0, %s32
      %s35 = sadd.s32 1, %s19
      %s36 = scalar_select %p33, %s35, %s19
      %p37 = scmp.ge.s32.totalorder %s36, 2
      %s38 = scalar_select %p37, 0, %s36
      %s40 = sadd.s32 %s39, 1
      %p43 = scmp.eq.s32.totalorder %s12, 1
      %p44 = scmp.ne.s32.totalorder %s39, %s41
      %p45 = scmp.eq.s32.totalorder %s12, 0
      %p46 = por %p44, %p45
      %p47 = scmp.ne.s32.totalorder %s39, %s41
      %p48 = scmp.eq.s32.totalorder %s17, 1
      %p49 = por %p47, %p48
      %p50 = scmp.ne.s32.totalorder %s41, %s42
      %p51 = scmp.eq.s32.totalorder %s17, 0
      %p52 = por %p50, %p51
      %p53 = scmp.ne.s32.totalorder %s41, %s42
      %p54 = scmp.eq.s32.totalorder %s18, 1
      %p55 = por %p53, %p54
      %p57 = scmp.ne.s32.totalorder %s42, %s56
      %p58 = scmp.eq.s32.totalorder %s18, 0
      %p59 = por %p57, %p58
      %s60 = ssub.s32 %s19, %s38
      %s61 = ssub.s32 %s20, %s34
      %s62 = sor.u32 %s60, %s61
      %s63 = ssub.s32 %s21, %s30
      %s64 = sor.u32 %s62, %s63
      %p65 = scmp.eq.s32.totalorder %s64, 0
      %s67 = sadd.s32 %s66, 1
      %s68 = scalar_select %p65, %s66, %s67
      %p71 = pneg %p65
      %p72 = scmp.eq.s32.totalorder %s12, 1
      %p73 = por %p71, %p72
      %p74 = scmp.ne.s32.totalorder %s66, %s69
      %p75 = scmp.eq.s32.totalorder %s12, 0
      %p76 = por %p74, %p75
      %p77 = scmp.ne.s32.totalorder %s66, %s69
      %p78 = scmp.eq.s32.totalorder %s17, 1
      %p79 = por %p77, %p78
      %p80 = scmp.ne.s32.totalorder %s69, %s70
      %p81 = scmp.eq.s32.totalorder %s17, 0
      %p82 = por %p80, %p81
      %p83 = scmp.ne.s32.totalorder %s69, %s70
      %p84 = scmp.eq.s32.totalorder %s18, 1
      %p85 = por %p83, %p84
      %p87 = scmp.ne.s32.totalorder %s70, %s86
      %p88 = scmp.eq.s32.totalorder %s18, 0
      %p89 = por %p87, %p88
      %s90 = ssub.s32 %s19, %s38
      %s91 = ssub.s32 %s20, %s34
      %s92 = sor.u32 %s90, %s91
      %p93 = scmp.eq.s32.totalorder %s92, 0
      %s95 = sadd.s32 %s94, 1
      %s96 = scalar_select %p93, %s94, %s95
      %p99 = pneg %p93
      %p100 = scmp.eq.s32.totalorder %s12, 1
      %p101 = por %p99, %p100
      %p102 = scmp.ne.s32.totalorder %s94, %s97
      %p103 = scmp.eq.s32.totalorder %s12, 0
      %p104 = por %p102, %p103
      %p105 = scmp.ne.s32.totalorder %s94, %s97
      %p106 = scmp.eq.s32.totalorder %s17, 1
      %p107 = por %p105, %p106
      %p108 = scmp.ne.s32.totalorder %s97, %s98
      %p109 = scmp.eq.s32.totalorder %s17, 0
      %p110 = por %p108, %p109
      %p111 = scmp.ne.s32.totalorder %s97, %s98
      %p112 = scmp.eq.s32.totalorder %s18, 1
      %p113 = por %p111, %p112
      %p115 = scmp.ne.s32.totalorder %s98, %s114
      %p116 = scmp.eq.s32.totalorder %s18, 0
      %p117 = por %p115, %p116
      %p118 = scmp.le.s32.totalorder 1, %s12
      %p119 = scmp.lt.s32.totalorder %s12, 3
      %p120 = pnand %p118, %p119
      %p121 = pneg %p120
      // Predicated region
      $region9: #{tpu_custom_call.1} parent=5 // pred_check
        _
      $region10: #{tpu_custom_call.1} parent=5 // pred_check_branch
        %123 = sbr.rel (%p120) target = $region12
      $region11: #{tpu_custom_call.1} parent=5 // pred_region
        %s124 = ssub.s32 %s12, 1
        // Predicated region
        $region13: #{tpu_custom_call.1} parent=11 // pred_check
          %p125 = pneg %p52
        $region14: #{tpu_custom_call.1} parent=11 // pred_check_branch
          %127 = sbr.rel (%p125) target = $region16
        $region15: #{tpu_custom_call.1} parent=11 // pred_region
          _
        $region16: #{tpu_custom_call.1} parent=11 // pred_fallthru
          _
      $region12: #{tpu_custom_call.1} parent=5 // pred_fallthru
        _
      %p128 = scmp.lt.s32.totalorder %s12, 2
      // Predicated region
      $region17: #{tpu_custom_call.1} parent=5 // pred_check
        %p129 = pneg %p128
      $region18: #{tpu_custom_call.1} parent=5 // pred_check_branch
        %131 = sbr.rel (%p129) target = $region20
      $region19: #{tpu_custom_call.1} parent=5 // pred_region
        // Predicated region
        $region21: #{tpu_custom_call.1} parent=19 // pred_check
          %p132 = pneg %p76
        $region22: #{tpu_custom_call.1} parent=19 // pred_check_branch
          %134 = sbr.rel (%p132) target = $region24
        $region23: #{tpu_custom_call.1} parent=19 // pred_region
          %s135 = sand.u32 %s66, 1
          %s136 = scalar_lea.sflag [#allocation5], %s135
          %s137 = sand.u32 %s66, 1
          %s138 = smul.addr %s137, 8
          %s139 = scalar_lea.vmem [#allocation4], %s138
          %s140 = smul.u32 2, %s21
          %s142 = ssub.s32 128, 128
          %143 = vsyncadd %s136, %s142
          %s144 = smul.addr %s20, 2
          %s145 = sadd.s32 %s140, %s144
          %s146 = smul.addr %s19, 2
          %s147 = sadd.s32 %s145, %s146
          %s148 = smul.addr %s147, 64
          %s149 = scalar_lea.hbm %s1, %s148
          %s151 = sshll.u32 %s139, 4
          %s152 = int_to_ptr.vmem [resolvable:$true] %s151
          %154 = dma.hbm_to_vmem [thread:$0]  %s149, 128, %s152, %s136
        $region24: #{tpu_custom_call.1} parent=19 // pred_fallthru
          _
      $region20: #{tpu_custom_call.1} parent=5 // pred_fallthru
        _
      %p155 = scmp.le.s32.totalorder 1, %s12
      %p156 = scmp.lt.s32.totalorder %s12, 3
      %p157 = pnand %p155, %p156
      %p158 = pneg %p157
      // Predicated region
      $region25: #{tpu_custom_call.1} parent=5 // pred_check
        _
      $region26: #{tpu_custom_call.1} parent=5 // pred_check_branch
        %160 = sbr.rel (%p157) target = $region28
      $region27: #{tpu_custom_call.1} parent=5 // pred_region
        %s161 = ssub.s32 %s12, 1
        %s162 = sand.u32 %s69, 1
        %s163 = scalar_lea.sflag [#allocation5], %s162
        %s164 = sand.u32 %s69, 1
        %s165 = smul.addr %s164, 8
        %s166 = scalar_lea.vmem [#allocation4], %s165
        // Predicated region
        $region29: #{tpu_custom_call.1} parent=27 // pred_check
          %p167 = pneg %p82
        $region30: #{tpu_custom_call.1} parent=27 // pred_check_branch
          %169 = sbr.rel (%p167) target = $region32
        $region31: #{tpu_custom_call.1} parent=27 // pred_region
          %170 = dma.done %s163, 128
        $region32: #{tpu_custom_call.1} parent=27 // pred_fallthru
          _
        %p171 = pneg %p52
        %p172 = pneg %p49
        %s173 = sand.u32 %s69, 1
        %s174 = scalar_lea.sflag [#allocation5], %s173
        %s175 = sand.u32 %s69, 1
        %s176 = smul.addr %s175, 8
        %s177 = scalar_lea.vmem [#allocation4], %s176
        %p178 = pneg %p82
        %p179 = pneg %p79
        %p180 = pneg %p110
        %p181 = pneg %p107
        %p182 = scmp.lt.s32.totalorder %s22, 1
        %s183 = scalar_select %p182, %s22, 1
        %p184 = scmp.lt.s32.totalorder %s23, 0
        %s185 = scalar_select %p184, %s23, 0
        %s186 = sadd.s32 %s185, %s183
        %s187 = smul.addr %s186, 4
        %s188 = scalar_lea.vmem %s2, %s187
        %s189 = smul.u32 2, %s24
        %p190 = scmp.lt.s32.totalorder %s22, 1
        %s191 = scalar_select %p190, %s22, 1
        %p192 = scmp.lt.s32.totalorder %s23, 0
        %s193 = scalar_select %p192, %s23, 0
        %s194 = sadd.s32 %s193, %s191
        %s195 = smul.addr %s194, 4
        %s196 = scalar_lea.vmem %s2, %s195
        %v197 = vld [vmem:[%s166] sm:$0xff]
        %v198 = vmax.f32 %v197, 0.0001
        %s199 = sld [smem:[#allocation3]]
        %v200 = vlog2.pop %v198
        %v201 = vmul.f32 %v200, 0.6931472
        %v202 = vstv %s199
        %v203 = vmul.f32 %v202, %v201
        %v204 = vmul.f32 %v203, 1.442695
        %v205 = vpow.pop %v204
        %v206 = vstv %s199
        %v207 = vrcp.pop %v206
        %s208 = vtos %v207
        %p209 = scmp.eq.s32.totalorder %s24, 0
        // Predicated region
        $region33: #{tpu_custom_call.1} parent=27 // pred_check
          %p210 = pneg %p209
        $region34: #{tpu_custom_call.1} parent=27 // pred_check_branch
          %212 = sbr.rel (%p210) target = $region36
        $region35: #{tpu_custom_call.1} parent=27 // pred_region
          %213 = vst [vmem:[#allocation2] sm:$0xff] %v205
        $region36: #{tpu_custom_call.1} parent=27 // pred_fallthru
          _
        %p214 = scmp.gt.s32.totalorder %s24, 0
        // Predicated region
        $region37: #{tpu_custom_call.1} parent=27 // pred_check
          %p215 = pneg %p214
        $region38: #{tpu_custom_call.1} parent=27 // pred_check_branch
          %217 = sbr.rel (%p215) target = $region40
        $region39: #{tpu_custom_call.1} parent=27 // pred_region
          %v218 = vld [vmem:[#allocation2] sm:$0xff]
          %v219 = vadd.f32 %v218, %v205
          %220 = vst [vmem:[#allocation2] sm:$0xff] %v219
        $region40: #{tpu_custom_call.1} parent=27 // pred_fallthru
          _
        // Predicated region
        $region41: #{tpu_custom_call.1} parent=27 // pred_check
          %p221 = pneg %p209
        $region42: #{tpu_custom_call.1} parent=27 // pred_check_branch
          %223 = sbr.rel (%p221) target = $region44
        $region43: #{tpu_custom_call.1} parent=27 // pred_region
          %v224 = vld [vmem:[#allocation2] sm:$0xff]
          %v226 = vcombine.high %v224, %v224
          %vm228 = vcmask 1043456
          %v229 = vsel %vm228, %v224, 0.0
          %v230 = vsel %vm228, %v226, 0.0
          %v231 = vadd.f32 %v229, %v230
          %232 = vadd.xlane.f32.xlu0 %v231
          %v233 = vpop.xlane.xlu0 %232
          %v234 = vlog2.pop %v233
          %v235 = vmul.f32 %v234, 0.6931472
          %v236 = vsub.f32 %v235, 5.5451775
          %v237 = vstv %s208
          %v238 = vmul.f32 %v236, %v237
          %v239 = vmul.f32 %v238, 1.442695
          %v240 = vpow.pop %v239
          %vm241 = vcmask 3072
          %242 = vst.msk [vmem:[%s196] sm:$0xf] %vm241, %v240
        $region44: #{tpu_custom_call.1} parent=27 // pred_fallthru
          _
        %p243 = scmp.lt.s32.totalorder %s22, 1
        %s244 = scalar_select %p243, %s22, 1
        %p245 = scmp.lt.s32.totalorder %s23, 0
        %s246 = scalar_select %p245, %s23, 0
        %s247 = sadd.s32 %s246, %s244
        %s248 = smul.addr %s247, 4
        %s249 = scalar_lea.vmem %s2, %s248
        // Predicated region
        $region45: #{tpu_custom_call.1} parent=27 // pred_check
          %p250 = pneg %p107
        $region46: #{tpu_custom_call.1} parent=27 // pred_check_branch
          %252 = sbr.rel (%p250) target = $region48
        $region47: #{tpu_custom_call.1} parent=27 // pred_region
          _
        $region48: #{tpu_custom_call.1} parent=27 // pred_fallthru
          _
      $region28: #{tpu_custom_call.1} parent=5 // pred_fallthru
        _
      %p253 = scmp.le.s32.totalorder 2, %s12
      // Predicated region
      $region49: #{tpu_custom_call.1} parent=5 // pred_check
        %p254 = pneg %p253
      $region50: #{tpu_custom_call.1} parent=5 // pred_check_branch
        %256 = sbr.rel (%p254) target = $region52
      $region51: #{tpu_custom_call.1} parent=5 // pred_region
        %s257 = ssub.s32 %s12, 2
        // Predicated region
        $region53: #{tpu_custom_call.1} parent=51 // pred_check
          %p258 = pneg %p113
        $region54: #{tpu_custom_call.1} parent=51 // pred_check_branch
          %260 = sbr.rel (%p258) target = $region56
        $region55: #{tpu_custom_call.1} parent=51 // pred_region
          %p261 = scmp.lt.s32.totalorder %s25, 1
          %s262 = scalar_select %p261, %s25, 1
          %p263 = scmp.lt.s32.totalorder %s26, 0
          %s264 = scalar_select %p263, %s26, 0
          %s265 = sadd.s32 %s264, %s262
          %s266 = smul.addr %s265, 4
          %s267 = scalar_lea.vmem %s2, %s266
        $region56: #{tpu_custom_call.1} parent=51 // pred_fallthru
          _
      $region52: #{tpu_custom_call.1} parent=5 // pred_fallthru
        _
    $region6: #{tpu_custom_call.1} parent=1 // loop_footer
      %s16 = sadd.s32 1, %s12
    $region7: #{tpu_custom_call.1} parent=1 // loop_footer_branch
      %11 = sbr.rel target = $region3
    $region8: #{tpu_custom_call.1} parent=1 // loop_exit
      _
    %268 = vsyncpa [#allocation5], 1
    %s269 = scalar_lea.sflag [#allocation5], 1
    %270 = vsyncpa %s269, 1

</llo_original>
